<compile_context>
chip_gen: v7x
topology: tpu7x:2x2x1
jax: 0.10.0
libtpu: 0.0.40
codegen_flags: <defaults>
</compile_context>

<pallas_src>
import functools

import jax
import jax.numpy as jnp
import numpy as np
from jax.experimental import pallas as pl
from jax.experimental.pallas import tpu as pltpu


def _round_up(v, m):
    return (v + m - 1) // m * m


def _tensorcores_per_device():
    """Best-effort TensorCore count behind one JAX device (trace-time Python only)."""
    try:
        kind = jax.devices()[0].device_kind.lower()
    except Exception:
        return 1
    # Chips that expose 2 TensorCores per device: v4 / v5p (megacore), v7x.
    return 2 if any(t in kind for t in ("v4", "v5p", "v7", "7x")) else 1


def _make_kernel(C):
    """Channel-mixing kernel: o[c, :] = sum_i w[c,i] * x[i, :] + bias[c] + other."""

    def kernel(w_ref, b_ref, other_ref, x_ref, o_ref):
        # w_ref: SMEM (C*C,) f32   b_ref: SMEM (C,) f32   other_ref: SMEM (1,) f32
        # x_ref / o_ref: VMEM (C, T) channel-major pixel tiles (batch axis squeezed).
        oth = other_ref[0]
        for c in range(C):                       # C is tiny & static -> fully unrolled
            acc = x_ref[0:1, :] * w_ref[c * C]   # (1, T) broadcast-FMA chain on the VPU
            for i in range(1, C):
                acc = acc + x_ref[i:i + 1, :] * w_ref[c * C + i]
            o_ref[c:c + 1, :] = acc + (b_ref[c] + oth)

    return kernel


@functools.partial(jax.jit, static_argnames=("lane_tile",))
def conv1x1_pad1_add(x, weight, bias, other=1.0, padding1=None, *, lane_tile=None):
    """Forward pass of the PyTorch Model.

    x:      (N, C, H, W) float32   (NCHW, like PyTorch)
    weight: (C, C, 1, 1) float32   (Conv2d(C, C, 1) weight)
    bias:   (C,)         float32
    Returns (N, C, H+2, W+2) float32 (padding=1 with a 1x1 kernel grows spatial dims).
    """
    N, C, H, W = x.shape
    P = H * W                                     # unpadded pixels per image

    # Channel-major slab view (N, C, P) — a pure reshape, no transpose / no channel pad.
    xf = x.reshape(N, C, P).astype(jnp.float32)

    if lane_tile is None:
        # 1 step per image on single-TC chips; 2 steps at N==1 on dual-TC chips.
        target_steps = _tensorcores_per_device() if N == 1 else 1
        lane_tile = _round_up(pl.cdiv(P, target_steps), 128)
        lane_tile = min(lane_tile, 32768)          # <= 512 KiB/block — far inside VMEM
    else:
        lane_tile = _round_up(int(lane_tile), 128)  # defensive: keep lanes 128-aligned
    assert lane_tile % 128 == 0
    Pp = _round_up(P, lane_tile)
    n_tiles = Pp // lane_tile
    if Pp != P:
        xf = jnp.pad(xf, ((0, 0), (0, 0), (0, Pp - P)))

    # Scalar-prefetch operands (land in SMEM before the grid runs).
    w_smem = weight.reshape(C * C).astype(jnp.float32)      # w_smem[o*C + i] = W[o, i]
    b_smem = bias.reshape(C).astype(jnp.float32)
    other_arr = jnp.asarray(other, jnp.float32)
    other_smem = other_arr.reshape(1)

    out = pl.pallas_call(
        _make_kernel(C),
        out_shape=jax.ShapeDtypeStruct((N, C, Pp), jnp.float32),
        grid_spec=pltpu.PrefetchScalarGridSpec(
            num_scalar_prefetch=3,
            grid=(N, n_tiles),
            in_specs=[
                pl.BlockSpec((pl.Squeezed(), C, lane_tile),
                             lambda n, i, *_: (n, 0, i)),      # x slab tile
            ],
            out_specs=pl.BlockSpec((pl.Squeezed(), C, lane_tile),
                                   lambda n, i, *_: (n, 0, i)),
        ),
        compiler_params=pltpu.CompilerParams(
            dimension_semantics=("parallel", "parallel")),
    )(w_smem, b_smem, other_smem, xf)

    # Border-only XLA epilogue: interior already carries conv + bias + other from the
    # kernel; the 1-pixel border of a zero-padded 1x1 conv sees only bias + other.
    interior = out[:, :, :P].reshape(N, C, H, W)
    border = jnp.broadcast_to((b_smem + other_arr).reshape(1, C, 1, 1),
                              (N, C, H + 2, W + 2))
    y = jax.lax.dynamic_update_slice(border, interior, (0, 0, 1, 1))
    if padding1 is not None:
        y = y + padding1                # optional branch: one extra fused add
    return y


def _reference(x, weight, bias, other=1.0, padding1=None):
    N, C, H, W = x.shape
    xp = jnp.pad(x, ((0, 0), (0, 0), (1, 1), (1, 1)))
    v1 = jnp.einsum('oi,nihw->nohw', weight.reshape(C, C), xp) + bias.reshape(1, C, 1, 1)
    if padding1 is not None:
        v1 = v1 + padding1
    return v1 + other


def _make_params(key, C):
    kw, kb = jax.random.split(key)
    fan_in = C  # 1x1 kernel
    bound = 1.0 / np.sqrt(fan_in)
    weight = jax.random.uniform(kw, (C, C, 1, 1), minval=-bound, maxval=bound,
                                dtype=jnp.float32)
    bias = jax.random.uniform(kb, (C,), minval=-bound, maxval=bound, dtype=jnp.float32)
    return weight, bias


if __name__ == "__main__":
    key = jax.random.PRNGKey(0)
    kx1, kx2, kx3, kp, kparam = jax.random.split(key, 5)
    C = 4
    weight, bias = _make_params(kparam, C)

    # --- Test 1: module's default path, x1 = randn(1, 4, 64, 64), other=1, padding1=None
    x1 = jax.random.normal(kx1, (1, C, 64, 64), dtype=jnp.float32)
    out1 = jax.block_until_ready(conv1x1_pad1_add(x1, weight, bias, other=1.0))
    assert out1.shape == (1, C, 66, 66), out1.shape
    ref1 = _reference(x1, weight, bias, other=1.0)
    np.testing.assert_allclose(np.asarray(out1), np.asarray(ref1), rtol=1e-5, atol=1e-5)

    # --- Test 2: batched small input with tensor padding1 + non-default `other`
    x2 = jax.random.normal(kx2, (2, C, 16, 16), dtype=jnp.float32)
    padding1 = jax.random.normal(kp, (2, C, 18, 18), dtype=jnp.float32)
    out2 = jax.block_until_ready(
        conv1x1_pad1_add(x2, weight, bias, other=2.5, padding1=padding1))
    ref2 = _reference(x2, weight, bias, other=2.5, padding1=padding1)
    np.testing.assert_allclose(np.asarray(out2), np.asarray(ref2), rtol=1e-5, atol=1e-5)

    # --- Test 3: spatial size whose pixel count is not a multiple of 128 (lane-pad path)
    x3 = jax.random.normal(kx3, (2, C, 10, 12), dtype=jnp.float32)
    out3 = jax.block_until_ready(conv1x1_pad1_add(x3, weight, bias, other=-0.5))
    ref3 = _reference(x3, weight, bias, other=-0.5)
    np.testing.assert_allclose(np.asarray(out3), np.asarray(ref3), rtol=1e-5, atol=1e-5)

    print("KERNEL_OK")
</pallas_src>

<mosaic_0001>
module attributes {stable_mosaic.version = 11 : i64} {
  func.func @kernel(%arg0: i32, %arg1: i32, %arg2: memref<16xf32, #tpu.memory_space<smem>>, %arg3: memref<4xf32, #tpu.memory_space<smem>>, %arg4: memref<1xf32, #tpu.memory_space<smem>>, %arg5: memref<1x4x4096xf32, #tpu.memory_space<vmem>>, %arg6: memref<1x4x4096xf32, #tpu.memory_space<vmem>>) attributes {dimension_semantics = [#tpu.dimension_semantics<parallel>, #tpu.dimension_semantics<parallel>], iteration_bounds = array<i64: 1, 1>, scalar_prefetch = 3 : i64, scratch_operands = 0 : i64, tpu.core_type = #tpu.core_type<tc>, window_params = [{transform_indices = @transform_0, window_bounds = array<i64: 1, 4, 4096>}, {transform_indices = @transform_1, window_bounds = array<i64: 1, 4, 4096>}]} {
    %c0 = arith.constant 0 : index
    %0 = memref.load %arg4[%c0] : memref<1xf32, #tpu.memory_space<smem>>
    %c0_0 = arith.constant 0 : index
    %c0_1 = arith.constant 0 : index
    %c0_2 = arith.constant 0 : index
    %1 = vector.load %arg5[%c0_0, %c0_1, %c0_2] : memref<1x4x4096xf32, #tpu.memory_space<vmem>>, vector<1x1x4096xf32>
    %2 = vector.shape_cast %1 : vector<1x1x4096xf32> to vector<1x4096xf32>
    %c0_3 = arith.constant 0 : index
    %3 = memref.load %arg2[%c0_3] : memref<16xf32, #tpu.memory_space<smem>>
    %4 = vector.broadcast %3 : f32 to vector<1x4096xf32>
    %5 = arith.mulf %2, %4 : vector<1x4096xf32>
    %c0_4 = arith.constant 0 : index
    %c1 = arith.constant 1 : index
    %c0_5 = arith.constant 0 : index
    %6 = vector.load %arg5[%c0_4, %c1, %c0_5] : memref<1x4x4096xf32, #tpu.memory_space<vmem>>, vector<1x1x4096xf32>
    %7 = vector.shape_cast %6 : vector<1x1x4096xf32> to vector<1x4096xf32>
    %c1_6 = arith.constant 1 : index
    %8 = memref.load %arg2[%c1_6] : memref<16xf32, #tpu.memory_space<smem>>
    %9 = vector.broadcast %8 : f32 to vector<1x4096xf32>
    %10 = arith.mulf %7, %9 : vector<1x4096xf32>
    %11 = arith.addf %5, %10 : vector<1x4096xf32>
    %c0_7 = arith.constant 0 : index
    %c2 = arith.constant 2 : index
    %c0_8 = arith.constant 0 : index
    %12 = vector.load %arg5[%c0_7, %c2, %c0_8] : memref<1x4x4096xf32, #tpu.memory_space<vmem>>, vector<1x1x4096xf32>
    %13 = vector.shape_cast %12 : vector<1x1x4096xf32> to vector<1x4096xf32>
    %c2_9 = arith.constant 2 : index
    %14 = memref.load %arg2[%c2_9] : memref<16xf32, #tpu.memory_space<smem>>
    %15 = vector.broadcast %14 : f32 to vector<1x4096xf32>
    %16 = arith.mulf %13, %15 : vector<1x4096xf32>
    %17 = arith.addf %11, %16 : vector<1x4096xf32>
    %c0_10 = arith.constant 0 : index
    %c3 = arith.constant 3 : index
    %c0_11 = arith.constant 0 : index
    %18 = vector.load %arg5[%c0_10, %c3, %c0_11] : memref<1x4x4096xf32, #tpu.memory_space<vmem>>, vector<1x1x4096xf32>
    %19 = vector.shape_cast %18 : vector<1x1x4096xf32> to vector<1x4096xf32>
    %c3_12 = arith.constant 3 : index
    %20 = memref.load %arg2[%c3_12] : memref<16xf32, #tpu.memory_space<smem>>
    %21 = vector.broadcast %20 : f32 to vector<1x4096xf32>
    %22 = arith.mulf %19, %21 : vector<1x4096xf32>
    %23 = arith.addf %17, %22 : vector<1x4096xf32>
    %c0_13 = arith.constant 0 : index
    %24 = memref.load %arg3[%c0_13] : memref<4xf32, #tpu.memory_space<smem>>
    %25 = arith.addf %24, %0 : f32
    %26 = vector.broadcast %25 : f32 to vector<1x4096xf32>
    %27 = arith.addf %23, %26 : vector<1x4096xf32>
    %c0_14 = arith.constant 0 : index
    %c0_15 = arith.constant 0 : index
    %c0_16 = arith.constant 0 : index
    %28 = vector.load %arg6[%c0_14, %c0_15, %c0_16] : memref<1x4x4096xf32, #tpu.memory_space<vmem>>, vector<1x1x4096xf32>
    %29 = vector.shape_cast %28 : vector<1x1x4096xf32> to vector<1x4096xf32>
    %30 = vector.shape_cast %27 : vector<1x4096xf32> to vector<1x1x4096xf32>
    tpu.vector_store %arg6[%c0_14, %c0_15, %c0_16], %30 {strides = array<i32>} : memref<1x4x4096xf32, #tpu.memory_space<vmem>>, vector<1x1x4096xf32>,
    %c0_17 = arith.constant 0 : index
    %c0_18 = arith.constant 0 : index
    %c0_19 = arith.constant 0 : index
    %31 = vector.load %arg5[%c0_17, %c0_18, %c0_19] : memref<1x4x4096xf32, #tpu.memory_space<vmem>>, vector<1x1x4096xf32>
    %32 = vector.shape_cast %31 : vector<1x1x4096xf32> to vector<1x4096xf32>
    %c4 = arith.constant 4 : index
    %33 = memref.load %arg2[%c4] : memref<16xf32, #tpu.memory_space<smem>>
    %34 = vector.broadcast %33 : f32 to vector<1x4096xf32>
    %35 = arith.mulf %32, %34 : vector<1x4096xf32>
    %c0_20 = arith.constant 0 : index
    %c1_21 = arith.constant 1 : index
    %c0_22 = arith.constant 0 : index
    %36 = vector.load %arg5[%c0_20, %c1_21, %c0_22] : memref<1x4x4096xf32, #tpu.memory_space<vmem>>, vector<1x1x4096xf32>
    %37 = vector.shape_cast %36 : vector<1x1x4096xf32> to vector<1x4096xf32>
    %c5 = arith.constant 5 : index
    %38 = memref.load %arg2[%c5] : memref<16xf32, #tpu.memory_space<smem>>
    %39 = vector.broadcast %38 : f32 to vector<1x4096xf32>
    %40 = arith.mulf %37, %39 : vector<1x4096xf32>
    %41 = arith.addf %35, %40 : vector<1x4096xf32>
    %c0_23 = arith.constant 0 : index
    %c2_24 = arith.constant 2 : index
    %c0_25 = arith.constant 0 : index
    %42 = vector.load %arg5[%c0_23, %c2_24, %c0_25] : memref<1x4x4096xf32, #tpu.memory_space<vmem>>, vector<1x1x4096xf32>
    %43 = vector.shape_cast %42 : vector<1x1x4096xf32> to vector<1x4096xf32>
    %c6 = arith.constant 6 : index
    %44 = memref.load %arg2[%c6] : memref<16xf32, #tpu.memory_space<smem>>
    %45 = vector.broadcast %44 : f32 to vector<1x4096xf32>
    %46 = arith.mulf %43, %45 : vector<1x4096xf32>
    %47 = arith.addf %41, %46 : vector<1x4096xf32>
    %c0_26 = arith.constant 0 : index
    %c3_27 = arith.constant 3 : index
    %c0_28 = arith.constant 0 : index
    %48 = vector.load %arg5[%c0_26, %c3_27, %c0_28] : memref<1x4x4096xf32, #tpu.memory_space<vmem>>, vector<1x1x4096xf32>
    %49 = vector.shape_cast %48 : vector<1x1x4096xf32> to vector<1x4096xf32>
    %c7 = arith.constant 7 : index
    %50 = memref.load %arg2[%c7] : memref<16xf32, #tpu.memory_space<smem>>
    %51 = vector.broadcast %50 : f32 to vector<1x4096xf32>
    %52 = arith.mulf %49, %51 : vector<1x4096xf32>
    %53 = arith.addf %47, %52 : vector<1x4096xf32>
    %c1_29 = arith.constant 1 : index
    %54 = memref.load %arg3[%c1_29] : memref<4xf32, #tpu.memory_space<smem>>
    %55 = arith.addf %54, %0 : f32
    %56 = vector.broadcast %55 : f32 to vector<1x4096xf32>
    %57 = arith.addf %53, %56 : vector<1x4096xf32>
    %c0_30 = arith.constant 0 : index
    %c1_31 = arith.constant 1 : index
    %c0_32 = arith.constant 0 : index
    %58 = vector.load %arg6[%c0_30, %c1_31, %c0_32] : memref<1x4x4096xf32, #tpu.memory_space<vmem>>, vector<1x1x4096xf32>
    %59 = vector.shape_cast %58 : vector<1x1x4096xf32> to vector<1x4096xf32>
    %60 = vector.shape_cast %57 : vector<1x4096xf32> to vector<1x1x4096xf32>
    tpu.vector_store %arg6[%c0_30, %c1_31, %c0_32], %60 {strides = array<i32>} : memref<1x4x4096xf32, #tpu.memory_space<vmem>>, vector<1x1x4096xf32>,
    %c0_33 = arith.constant 0 : index
    %c0_34 = arith.constant 0 : index
    %c0_35 = arith.constant 0 : index
    %61 = vector.load %arg5[%c0_33, %c0_34, %c0_35] : memref<1x4x4096xf32, #tpu.memory_space<vmem>>, vector<1x1x4096xf32>
    %62 = vector.shape_cast %61 : vector<1x1x4096xf32> to vector<1x4096xf32>
    %c8 = arith.constant 8 : index
    %63 = memref.load %arg2[%c8] : memref<16xf32, #tpu.memory_space<smem>>
    %64 = vector.broadcast %63 : f32 to vector<1x4096xf32>
    %65 = arith.mulf %62, %64 : vector<1x4096xf32>
    %c0_36 = arith.constant 0 : index
    %c1_37 = arith.constant 1 : index
    %c0_38 = arith.constant 0 : index
    %66 = vector.load %arg5[%c0_36, %c1_37, %c0_38] : memref<1x4x4096xf32, #tpu.memory_space<vmem>>, vector<1x1x4096xf32>
    %67 = vector.shape_cast %66 : vector<1x1x4096xf32> to vector<1x4096xf32>
    %c9 = arith.constant 9 : index
    %68 = memref.load %arg2[%c9] : memref<16xf32, #tpu.memory_space<smem>>
    %69 = vector.broadcast %68 : f32 to vector<1x4096xf32>
    %70 = arith.mulf %67, %69 : vector<1x4096xf32>
    %71 = arith.addf %65, %70 : vector<1x4096xf32>
    %c0_39 = arith.constant 0 : index
    %c2_40 = arith.constant 2 : index
    %c0_41 = arith.constant 0 : index
    %72 = vector.load %arg5[%c0_39, %c2_40, %c0_41] : memref<1x4x4096xf32, #tpu.memory_space<vmem>>, vector<1x1x4096xf32>
    %73 = vector.shape_cast %72 : vector<1x1x4096xf32> to vector<1x4096xf32>
    %c10 = arith.constant 10 : index
    %74 = memref.load %arg2[%c10] : memref<16xf32, #tpu.memory_space<smem>>
    %75 = vector.broadcast %74 : f32 to vector<1x4096xf32>
    %76 = arith.mulf %73, %75 : vector<1x4096xf32>
    %77 = arith.addf %71, %76 : vector<1x4096xf32>
    %c0_42 = arith.constant 0 : index
    %c3_43 = arith.constant 3 : index
    %c0_44 = arith.constant 0 : index
    %78 = vector.load %arg5[%c0_42, %c3_43, %c0_44] : memref<1x4x4096xf32, #tpu.memory_space<vmem>>, vector<1x1x4096xf32>
    %79 = vector.shape_cast %78 : vector<1x1x4096xf32> to vector<1x4096xf32>
    %c11 = arith.constant 11 : index
    %80 = memref.load %arg2[%c11] : memref<16xf32, #tpu.memory_space<smem>>
    %81 = vector.broadcast %80 : f32 to vector<1x4096xf32>
    %82 = arith.mulf %79, %81 : vector<1x4096xf32>
    %83 = arith.addf %77, %82 : vector<1x4096xf32>
    %c2_45 = arith.constant 2 : index
    %84 = memref.load %arg3[%c2_45] : memref<4xf32, #tpu.memory_space<smem>>
    %85 = arith.addf %84, %0 : f32
    %86 = vector.broadcast %85 : f32 to vector<1x4096xf32>
    %87 = arith.addf %83, %86 : vector<1x4096xf32>
    %c0_46 = arith.constant 0 : index
    %c2_47 = arith.constant 2 : index
    %c0_48 = arith.constant 0 : index
    %88 = vector.load %arg6[%c0_46, %c2_47, %c0_48] : memref<1x4x4096xf32, #tpu.memory_space<vmem>>, vector<1x1x4096xf32>
    %89 = vector.shape_cast %88 : vector<1x1x4096xf32> to vector<1x4096xf32>
    %90 = vector.shape_cast %87 : vector<1x4096xf32> to vector<1x1x4096xf32>
    tpu.vector_store %arg6[%c0_46, %c2_47, %c0_48], %90 {strides = array<i32>} : memref<1x4x4096xf32, #tpu.memory_space<vmem>>, vector<1x1x4096xf32>,
    %c0_49 = arith.constant 0 : index
    %c0_50 = arith.constant 0 : index
    %c0_51 = arith.constant 0 : index
    %91 = vector.load %arg5[%c0_49, %c0_50, %c0_51] : memref<1x4x4096xf32, #tpu.memory_space<vmem>>, vector<1x1x4096xf32>
    %92 = vector.shape_cast %91 : vector<1x1x4096xf32> to vector<1x4096xf32>
    %c12 = arith.constant 12 : index
    %93 = memref.load %arg2[%c12] : memref<16xf32, #tpu.memory_space<smem>>
    %94 = vector.broadcast %93 : f32 to vector<1x4096xf32>
    %95 = arith.mulf %92, %94 : vector<1x4096xf32>
    %c0_52 = arith.constant 0 : index
    %c1_53 = arith.constant 1 : index
    %c0_54 = arith.constant 0 : index
    %96 = vector.load %arg5[%c0_52, %c1_53, %c0_54] : memref<1x4x4096xf32, #tpu.memory_space<vmem>>, vector<1x1x4096xf32>
    %97 = vector.shape_cast %96 : vector<1x1x4096xf32> to vector<1x4096xf32>
    %c13 = arith.constant 13 : index
    %98 = memref.load %arg2[%c13] : memref<16xf32, #tpu.memory_space<smem>>
    %99 = vector.broadcast %98 : f32 to vector<1x4096xf32>
    %100 = arith.mulf %97, %99 : vector<1x4096xf32>
    %101 = arith.addf %95, %100 : vector<1x4096xf32>
    %c0_55 = arith.constant 0 : index
    %c2_56 = arith.constant 2 : index
    %c0_57 = arith.constant 0 : index
    %102 = vector.load %arg5[%c0_55, %c2_56, %c0_57] : memref<1x4x4096xf32, #tpu.memory_space<vmem>>, vector<1x1x4096xf32>
    %103 = vector.shape_cast %102 : vector<1x1x4096xf32> to vector<1x4096xf32>
    %c14 = arith.constant 14 : index
    %104 = memref.load %arg2[%c14] : memref<16xf32, #tpu.memory_space<smem>>
    %105 = vector.broadcast %104 : f32 to vector<1x4096xf32>
    %106 = arith.mulf %103, %105 : vector<1x4096xf32>
    %107 = arith.addf %101, %106 : vector<1x4096xf32>
    %c0_58 = arith.constant 0 : index
    %c3_59 = arith.constant 3 : index
    %c0_60 = arith.constant 0 : index
    %108 = vector.load %arg5[%c0_58, %c3_59, %c0_60] : memref<1x4x4096xf32, #tpu.memory_space<vmem>>, vector<1x1x4096xf32>
    %109 = vector.shape_cast %108 : vector<1x1x4096xf32> to vector<1x4096xf32>
    %c15 = arith.constant 15 : index
    %110 = memref.load %arg2[%c15] : memref<16xf32, #tpu.memory_space<smem>>
    %111 = vector.broadcast %110 : f32 to vector<1x4096xf32>
    %112 = arith.mulf %109, %111 : vector<1x4096xf32>
    %113 = arith.addf %107, %112 : vector<1x4096xf32>
    %c3_61 = arith.constant 3 : index
    %114 = memref.load %arg3[%c3_61] : memref<4xf32, #tpu.memory_space<smem>>
    %115 = arith.addf %114, %0 : f32
    %116 = vector.broadcast %115 : f32 to vector<1x4096xf32>
    %117 = arith.addf %113, %116 : vector<1x4096xf32>
    %c0_62 = arith.constant 0 : index
    %c3_63 = arith.constant 3 : index
    %c0_64 = arith.constant 0 : index
    %118 = vector.load %arg6[%c0_62, %c3_63, %c0_64] : memref<1x4x4096xf32, #tpu.memory_space<vmem>>, vector<1x1x4096xf32>
    %119 = vector.shape_cast %118 : vector<1x1x4096xf32> to vector<1x4096xf32>
    %120 = vector.shape_cast %117 : vector<1x4096xf32> to vector<1x1x4096xf32>
    tpu.vector_store %arg6[%c0_62, %c3_63, %c0_64], %120 {strides = array<i32>} : memref<1x4x4096xf32, #tpu.memory_space<vmem>>, vector<1x1x4096xf32>,
    return
  }
  func.func @transform_0(%arg0: i32, %arg1: i32, %arg2: memref<16xf32, #tpu.memory_space<smem>>, %arg3: memref<4xf32, #tpu.memory_space<smem>>, %arg4: memref<1xf32, #tpu.memory_space<smem>>) -> (i32, i32, i32) {
    %c0_i32 = arith.constant 0 : i32
    %c0_i32_0 = arith.constant 0 : i32
    return %arg0, %c0_i32, %arg1 : i32, i32, i32
  }
  func.func @transform_1(%arg0: i32, %arg1: i32, %arg2: memref<16xf32, #tpu.memory_space<smem>>, %arg3: memref<4xf32, #tpu.memory_space<smem>>, %arg4: memref<1xf32, #tpu.memory_space<smem>>) -> (i32, i32, i32) {
    %c0_i32 = arith.constant 0 : i32
    %c0_i32_0 = arith.constant 0 : i32
    return %arg0, %c0_i32, %arg1 : i32, i32, i32
  }
}

</mosaic_0001>

<llo_original>
// kernel: conv1x1_pad1_add.1
$region0: #{conv1x1_pad1_add.1}
  #allocation0 [shape = 'u32[]', space=smem, size = 0x4, offset = 0x4, fixed_abs, tag = 'smem constant byte address 0x4 - core index']
  #allocation1 [shape = 'u32[144,128]{1,0:T(1,128)}', space=vmem, size = 0x12000, scoped, tag = 'internal scratch']
  #allocation2 [shape = 's32[1]{0}', space=sflag, size = 0x4, scoped, tag = 'scoped memory for conv1x1_pad1_add.1']
  #allocation3 [shape = 'u8[512]{0}', space=smem, size = 0x200, scoped, tag = 'prefetched SMEM operand 0']
  #allocation4 [shape = 'u8[512]{0}', space=smem, size = 0x200, scoped, tag = 'prefetched SMEM operand 1']
  #allocation5 [shape = 'f32[1]{0:T(128)S(6)}', space=smem, size = 0x200, scoped, tag = 'prefetched SMEM operand 2']
  %s0 = inlined_call_operand.vmem [shape: f32[16], index: 0, kind: input, shape index: {}]
  %s1 = inlined_call_operand.vmem [shape: f32[4], index: 1, kind: input, shape index: {}]
  %s2 = inlined_call_operand.<no memory space> [shape: f32[1], index: 2, kind: input, shape index: {}]
  %s3 = inlined_call_operand.vmem [shape: f32[1,4,4096], index: 3, kind: input, shape index: {}]
  %s4 = inlined_call_operand.vmem [shape: f32[1,4,4096], index: 4, kind: output, shape index: {}]
  %s5 = sld [smem:[#allocation0]]
  $region14: #{conv1x1_pad1_add.1} parent=0
    _
  %s7 = ssub.s32 1, %s5
  %s8 = scalar_select 0, %s7, %s5
  %s9 = sshll.u32 %s0, 4
  %s10 = int_to_ptr.vmem [resolvable:$true] %s9
  %12 = dma.vmem_to_smem %s10, 16, [#allocation3], [#allocation2]
  %s13 = sshll.u32 %s1, 4
  %s14 = int_to_ptr.vmem [resolvable:$true] %s13
  %16 = dma.vmem_to_smem %s14, 16, [#allocation4], [#allocation2]
  %17 = sst [smem:[#allocation5]] %s2
  %18 = dma.done [#allocation2], 32
  %19 = sfence
  // Predicated region
  $region2: #{conv1x1_pad1_add.1} parent=0 // pred_check
    _
  $region3: #{conv1x1_pad1_add.1} parent=0 // pred_check_branch
    %21 = sbr.rel (0) target = $region5
  $region4: #{conv1x1_pad1_add.1} parent=0 // pred_region
    _
  $region5: #{conv1x1_pad1_add.1} parent=0 // pred_fallthru
    _
  %s22 = sld [smem:[#allocation5]]
  %v23 = vld [vmem:[%s3] ss:$4 sm:$0xff]
  %s24 = scalar_lea.vmem %s3, 32
  %v25 = vld [vmem:[%s24] ss:$4 sm:$0xff]
  %s26 = scalar_lea.vmem %s3, 64
  %v27 = vld [vmem:[%s26] ss:$4 sm:$0xff]
  %s28 = scalar_lea.vmem %s3, 96
  %v29 = vld [vmem:[%s28] ss:$4 sm:$0xff]
  %s30 = sld [smem:[#allocation3]]
  %v31 = vstv %s30
  %v32 = vmul.f32 %v23, %v31
  %v33 = vmul.f32 %v25, %v31
  %v34 = vmul.f32 %v27, %v31
  %v35 = vmul.f32 %v29, %v31
  %s36 = scalar_lea.vmem %s3, 1
  %v37 = vld [vmem:[%s36] ss:$4 sm:$0xff]
  %s38 = scalar_lea.vmem %s3, 33
  %v39 = vld [vmem:[%s38] ss:$4 sm:$0xff]
  %s40 = scalar_lea.vmem %s3, 65
  %v41 = vld [vmem:[%s40] ss:$4 sm:$0xff]
  %s42 = scalar_lea.vmem %s3, 97
  %v43 = vld [vmem:[%s42] ss:$4 sm:$0xff]
  %s44 = sld [smem:[#allocation3 + $0x1]]
  %v45 = vstv %s44
  %v46 = vmul.f32 %v37, %v45
  %v47 = vmul.f32 %v39, %v45
  %v48 = vmul.f32 %v41, %v45
  %v49 = vmul.f32 %v43, %v45
  %v50 = vadd.f32 %v32, %v46
  %v51 = vadd.f32 %v33, %v47
  %v52 = vadd.f32 %v34, %v48
  %v53 = vadd.f32 %v35, %v49
  %s54 = scalar_lea.vmem %s3, 2
  %v55 = vld [vmem:[%s54] ss:$4 sm:$0xff]
  %s56 = scalar_lea.vmem %s3, 34
  %v57 = vld [vmem:[%s56] ss:$4 sm:$0xff]
  %s58 = scalar_lea.vmem %s3, 66
  %v59 = vld [vmem:[%s58] ss:$4 sm:$0xff]
  %s60 = scalar_lea.vmem %s3, 98
  %v61 = vld [vmem:[%s60] ss:$4 sm:$0xff]
  %s62 = sld [smem:[#allocation3 + $0x2]]
  %v63 = vstv %s62
  %v64 = vmul.f32 %v55, %v63
  %v65 = vmul.f32 %v57, %v63
  %v66 = vmul.f32 %v59, %v63
  %v67 = vmul.f32 %v61, %v63
  %v68 = vadd.f32 %v50, %v64
  %v69 = vadd.f32 %v51, %v65
  %v70 = vadd.f32 %v52, %v66
  %v71 = vadd.f32 %v53, %v67
  %s72 = scalar_lea.vmem %s3, 3
  %v73 = vld [vmem:[%s72] ss:$4 sm:$0xff]
  %s74 = scalar_lea.vmem %s3, 35
  %v75 = vld [vmem:[%s74] ss:$4 sm:$0xff]
  %s76 = scalar_lea.vmem %s3, 67
  %v77 = vld [vmem:[%s76] ss:$4 sm:$0xff]
  %s78 = scalar_lea.vmem %s3, 99
  %v79 = vld [vmem:[%s78] ss:$4 sm:$0xff]
  %s80 = sld [smem:[#allocation3 + $0x3]]
  %v81 = vstv %s80
  %v82 = vmul.f32 %v73, %v81
  %v83 = vmul.f32 %v75, %v81
  %v84 = vmul.f32 %v77, %v81
  %v85 = vmul.f32 %v79, %v81
  %v86 = vadd.f32 %v68, %v82
  %v87 = vadd.f32 %v69, %v83
  %v88 = vadd.f32 %v70, %v84
  %v89 = vadd.f32 %v71, %v85
  %s90 = sld [smem:[#allocation4]]
  %s91 = sadd.f32 %s90, %s22
  %v92 = vstv %s91
  %v93 = vadd.f32 %v86, %v92
  %v94 = vadd.f32 %v87, %v92
  %v95 = vadd.f32 %v88, %v92
  %v96 = vadd.f32 %v89, %v92
  %97 = vst [vmem:[%s4] ss:$4 sm:$0xff] %v93
  %s98 = scalar_lea.vmem %s4, 32
  %99 = vst [vmem:[%s98] ss:$4 sm:$0xff] %v94
  %s100 = scalar_lea.vmem %s4, 64
  %101 = vst [vmem:[%s100] ss:$4 sm:$0xff] %v95
  %s102 = scalar_lea.vmem %s4, 96
  %103 = vst [vmem:[%s102] ss:$4 sm:$0xff] %v96
  %v104 = vld [vmem:[%s3] ss:$4 sm:$0xff]
  %v105 = vld [vmem:[%s24] ss:$4 sm:$0xff]
  %v106 = vld [vmem:[%s26] ss:$4 sm:$0xff]
  %v107 = vld [vmem:[%s28] ss:$4 sm:$0xff]
  %s108 = sld [smem:[#allocation3 + $0x4]]
  %v109 = vstv %s108
  %v110 = vmul.f32 %v104, %v109
  %v111 = vmul.f32 %v105, %v109
  %v112 = vmul.f32 %v106, %v109
  %v113 = vmul.f32 %v107, %v109
  %v114 = vld [vmem:[%s36] ss:$4 sm:$0xff]
  %v115 = vld [vmem:[%s38] ss:$4 sm:$0xff]
  %v116 = vld [vmem:[%s40] ss:$4 sm:$0xff]
  %v117 = vld [vmem:[%s42] ss:$4 sm:$0xff]
  %s118 = sld [smem:[#allocation3 + $0x5]]
  %v119 = vstv %s118
  %v120 = vmul.f32 %v114, %v119
  %v121 = vmul.f32 %v115, %v119
  %v122 = vmul.f32 %v116, %v119
  %v123 = vmul.f32 %v117, %v119
  %v124 = vadd.f32 %v110, %v120
  %v125 = vadd.f32 %v111, %v121
  %v126 = vadd.f32 %v112, %v122
  %v127 = vadd.f32 %v113, %v123
  %v128 = vld [vmem:[%s54] ss:$4 sm:$0xff]
  %v129 = vld [vmem:[%s56] ss:$4 sm:$0xff]
  %v130 = vld [vmem:[%s58] ss:$4 sm:$0xff]
  %v131 = vld [vmem:[%s60] ss:$4 sm:$0xff]
  %s132 = sld [smem:[#allocation3 + $0x6]]
  %v133 = vstv %s132
  %v134 = vmul.f32 %v128, %v133
  %v135 = vmul.f32 %v129, %v133
  %v136 = vmul.f32 %v130, %v133
  %v137 = vmul.f32 %v131, %v133
  %v138 = vadd.f32 %v124, %v134
  %v139 = vadd.f32 %v125, %v135
  %v140 = vadd.f32 %v126, %v136
  %v141 = vadd.f32 %v127, %v137
  %v142 = vld [vmem:[%s72] ss:$4 sm:$0xff]
  %v143 = vld [vmem:[%s74] ss:$4 sm:$0xff]
  %v144 = vld [vmem:[%s76] ss:$4 sm:$0xff]
  %v145 = vld [vmem:[%s78] ss:$4 sm:$0xff]
  %s146 = sld [smem:[#allocation3 + $0x7]]
  %v147 = vstv %s146
  %v148 = vmul.f32 %v142, %v147
  %v149 = vmul.f32 %v143, %v147
  %v150 = vmul.f32 %v144, %v147
  %v151 = vmul.f32 %v145, %v147
  %v152 = vadd.f32 %v138, %v148
  %v153 = vadd.f32 %v139, %v149
  %v154 = vadd.f32 %v140, %v150
  %v155 = vadd.f32 %v141, %v151
  %s156 = sld [smem:[#allocation4 + $0x1]]
  %s157 = sadd.f32 %s156, %s22
  %v158 = vstv %s157
  %v159 = vadd.f32 %v152, %v158
  %v160 = vadd.f32 %v153, %v158
  %v161 = vadd.f32 %v154, %v158
  %v162 = vadd.f32 %v155, %v158
  %s163 = scalar_lea.vmem %s4, 1
  %164 = vst [vmem:[%s163] ss:$4 sm:$0xff] %v159
  %s165 = scalar_lea.vmem %s4, 33
  %166 = vst [vmem:[%s165] ss:$4 sm:$0xff] %v160
  %s167 = scalar_lea.vmem %s4, 65
  %168 = vst [vmem:[%s167] ss:$4 sm:$0xff] %v161
  %s169 = scalar_lea.vmem %s4, 97
  %170 = vst [vmem:[%s169] ss:$4 sm:$0xff] %v162
  %v171 = vld [vmem:[%s3] ss:$4 sm:$0xff]
  %v172 = vld [vmem:[%s24] ss:$4 sm:$0xff]
  %v173 = vld [vmem:[%s26] ss:$4 sm:$0xff]
  %v174 = vld [vmem:[%s28] ss:$4 sm:$0xff]
  %s175 = sld [smem:[#allocation3 + $0x8]]
  %v176 = vstv %s175
  %v177 = vmul.f32 %v171, %v176
  %v178 = vmul.f32 %v172, %v176
  %v179 = vmul.f32 %v173, %v176
  %v180 = vmul.f32 %v174, %v176
  %v181 = vld [vmem:[%s36] ss:$4 sm:$0xff]
  %v182 = vld [vmem:[%s38] ss:$4 sm:$0xff]
  %v183 = vld [vmem:[%s40] ss:$4 sm:$0xff]
  %v184 = vld [vmem:[%s42] ss:$4 sm:$0xff]
  %s185 = sld [smem:[#allocation3 + $0x9]]
  %v186 = vstv %s185
  %v187 = vmul.f32 %v181, %v186
  %v188 = vmul.f32 %v182, %v186
  %v189 = vmul.f32 %v183, %v186
  %v190 = vmul.f32 %v184, %v186
  %v191 = vadd.f32 %v177, %v187
  %v192 = vadd.f32 %v178, %v188
  %v193 = vadd.f32 %v179, %v189
  %v194 = vadd.f32 %v180, %v190
  %v195 = vld [vmem:[%s54] ss:$4 sm:$0xff]
  %v196 = vld [vmem:[%s56] ss:$4 sm:$0xff]
  %v197 = vld [vmem:[%s58] ss:$4 sm:$0xff]
  %v198 = vld [vmem:[%s60] ss:$4 sm:$0xff]
  %s199 = sld [smem:[#allocation3 + $0xa]]
  %v200 = vstv %s199
  %v201 = vmul.f32 %v195, %v200
  %v202 = vmul.f32 %v196, %v200
  %v203 = vmul.f32 %v197, %v200
  %v204 = vmul.f32 %v198, %v200
  %v205 = vadd.f32 %v191, %v201
  %v206 = vadd.f32 %v192, %v202
  %v207 = vadd.f32 %v193, %v203
  %v208 = vadd.f32 %v194, %v204
  %v209 = vld [vmem:[%s72] ss:$4 sm:$0xff]
  %v210 = vld [vmem:[%s74] ss:$4 sm:$0xff]
  %v211 = vld [vmem:[%s76] ss:$4 sm:$0xff]
  %v212 = vld [vmem:[%s78] ss:$4 sm:$0xff]
  %s213 = sld [smem:[#allocation3 + $0xb]]
  %v214 = vstv %s213
  %v215 = vmul.f32 %v209, %v214
  %v216 = vmul.f32 %v210, %v214
  %v217 = vmul.f32 %v211, %v214
  %v218 = vmul.f32 %v212, %v214
  %v219 = vadd.f32 %v205, %v215
  %v220 = vadd.f32 %v206, %v216
  %v221 = vadd.f32 %v207, %v217
  %v222 = vadd.f32 %v208, %v218
  %s223 = sld [smem:[#allocation4 + $0x2]]
  %s224 = sadd.f32 %s223, %s22
  %v225 = vstv %s224
  %v226 = vadd.f32 %v219, %v225
  %v227 = vadd.f32 %v220, %v225
  %v228 = vadd.f32 %v221, %v225
  %v229 = vadd.f32 %v222, %v225
  %s230 = scalar_lea.vmem %s4, 2
  %231 = vst [vmem:[%s230] ss:$4 sm:$0xff] %v226
  %s232 = scalar_lea.vmem %s4, 34
  %233 = vst [vmem:[%s232] ss:$4 sm:$0xff] %v227
  %s234 = scalar_lea.vmem %s4, 66
  %235 = vst [vmem:[%s234] ss:$4 sm:$0xff] %v228
  %s236 = scalar_lea.vmem %s4, 98
  %237 = vst [vmem:[%s236] ss:$4 sm:$0xff] %v229
  %v238 = vld [vmem:[%s3] ss:$4 sm:$0xff]
  %v239 = vld [vmem:[%s24] ss:$4 sm:$0xff]
  %v240 = vld [vmem:[%s26] ss:$4 sm:$0xff]
  %v241 = vld [vmem:[%s28] ss:$4 sm:$0xff]
  %s242 = sld [smem:[#allocation3 + $0xc]]
  %v243 = vstv %s242
  %v244 = vmul.f32 %v238, %v243
  %v245 = vmul.f32 %v239, %v243
  %v246 = vmul.f32 %v240, %v243
  %v247 = vmul.f32 %v241, %v243
  %v248 = vld [vmem:[%s36] ss:$4 sm:$0xff]
  %v249 = vld [vmem:[%s38] ss:$4 sm:$0xff]
  %v250 = vld [vmem:[%s40] ss:$4 sm:$0xff]
  %v251 = vld [vmem:[%s42] ss:$4 sm:$0xff]
  %s252 = sld [smem:[#allocation3 + $0xd]]
  %v253 = vstv %s252
  %v254 = vmul.f32 %v248, %v253
  %v255 = vmul.f32 %v249, %v253
  %v256 = vmul.f32 %v250, %v253
  %v257 = vmul.f32 %v251, %v253
  %v258 = vadd.f32 %v244, %v254
  %v259 = vadd.f32 %v245, %v255
  %v260 = vadd.f32 %v246, %v256
  %v261 = vadd.f32 %v247, %v257
  %v262 = vld [vmem:[%s54] ss:$4 sm:$0xff]
  %v263 = vld [vmem:[%s56] ss:$4 sm:$0xff]
  %v264 = vld [vmem:[%s58] ss:$4 sm:$0xff]
  %v265 = vld [vmem:[%s60] ss:$4 sm:$0xff]
  %s266 = sld [smem:[#allocation3 + $0xe]]
  %v267 = vstv %s266
  %v268 = vmul.f32 %v262, %v267
  %v269 = vmul.f32 %v263, %v267
  %v270 = vmul.f32 %v264, %v267
  %v271 = vmul.f32 %v265, %v267
  %v272 = vadd.f32 %v258, %v268
  %v273 = vadd.f32 %v259, %v269
  %v274 = vadd.f32 %v260, %v270
  %v275 = vadd.f32 %v261, %v271
  %v276 = vld [vmem:[%s72] ss:$4 sm:$0xff]
  %v277 = vld [vmem:[%s74] ss:$4 sm:$0xff]
  %v278 = vld [vmem:[%s76] ss:$4 sm:$0xff]
  %v279 = vld [vmem:[%s78] ss:$4 sm:$0xff]
  %s280 = sld [smem:[#allocation3 + $0xf]]
  %v281 = vstv %s280
  %v282 = vmul.f32 %v276, %v281
  %v283 = vmul.f32 %v277, %v281
  %v284 = vmul.f32 %v278, %v281
  %v285 = vmul.f32 %v279, %v281
  %v286 = vadd.f32 %v272, %v282
  %v287 = vadd.f32 %v273, %v283
  %v288 = vadd.f32 %v274, %v284
  %v289 = vadd.f32 %v275, %v285
  %s290 = sld [smem:[#allocation4 + $0x3]]
  %s291 = sadd.f32 %s290, %s22
  %v292 = vstv %s291
  %v293 = vadd.f32 %v286, %v292
  %v294 = vadd.f32 %v287, %v292
  %v295 = vadd.f32 %v288, %v292
  %v296 = vadd.f32 %v289, %v292
  %s297 = scalar_lea.vmem %s4, 3
  %298 = vst [vmem:[%s297] ss:$4 sm:$0xff] %v293
  %s299 = scalar_lea.vmem %s4, 35
  %300 = vst [vmem:[%s299] ss:$4 sm:$0xff] %v294
  %s301 = scalar_lea.vmem %s4, 67
  %302 = vst [vmem:[%s301] ss:$4 sm:$0xff] %v295
  %s303 = scalar_lea.vmem %s4, 99
  %304 = vst [vmem:[%s303] ss:$4 sm:$0xff] %v296
  // Predicated region
  $region6: #{conv1x1_pad1_add.1} parent=0 // pred_check
    _
  $region7: #{conv1x1_pad1_add.1} parent=0 // pred_check_branch
    %306 = sbr.rel (0) target = $region9
  $region8: #{conv1x1_pad1_add.1} parent=0 // pred_region
    _
  $region9: #{conv1x1_pad1_add.1} parent=0 // pred_fallthru
    _
  // Predicated region
  $region10: #{conv1x1_pad1_add.1} parent=0 // pred_check
    _
  $region11: #{conv1x1_pad1_add.1} parent=0 // pred_check_branch
    %308 = sbr.rel (0) target = $region13
  $region12: #{conv1x1_pad1_add.1} parent=0 // pred_region
    _
  $region13: #{conv1x1_pad1_add.1} parent=0 // pred_fallthru
    _

</llo_original>
